<compile_context>
chip_gen: v7x
topology: tpu7x:2x2x1
jax: 0.10.0
libtpu: 0.0.40
codegen_flags: <defaults>
</compile_context>

<pallas_src>
import jax
import jax.numpy as jnp
from jax.experimental import pallas as pl
from jax.experimental.pallas import tpu as pltpu


def mlp_kernel(x_ref, w1_ref, b1_ref, w2_ref, b2_ref, w3_ref, b3_ref, o_ref):
    """Feature-major fused MLP.

    x_ref: [F, TILE_B] (batch on lanes); w*: [out, in]; b*: [out, 1] (f32).
    """
    x = x_ref[...]
    wdt = w1_ref.dtype  # MXU operand dtype (f32 or bf16)

    # Layer 1: Linear(34 -> 10) + ReLU   (f32 accumulation on the MXU)
    h = jnp.dot(w1_ref[...], x, preferred_element_type=jnp.float32)
    h = jnp.maximum(h + b1_ref[...], 0.0)

    # Layer 2: Linear(10 -> 8) + ReLU
    h = jnp.dot(w2_ref[...], h.astype(wdt), preferred_element_type=jnp.float32)
    h = jnp.maximum(h + b2_ref[...], 0.0)

    # Layer 3: Linear(8 -> 1) + Sigmoid (exact reciprocal; the kernel is
    # HBM-bound so the divide is free — approx=True would push it to the EUP).
    h = jnp.dot(w3_ref[...], h.astype(wdt), preferred_element_type=jnp.float32)
    h = h + b3_ref[...]
    o_ref[...] = pl.reciprocal(1.0 + jnp.exp(-h), approx=False).astype(o_ref.dtype)


def mlp_forward(x, params, *, tile_b=512, compute_dtype=jnp.float32):
    """x: [B, n_inputs] f32. Returns [B, 1] f32 (sigmoid probabilities)."""
    B, F = x.shape
    w1, b1 = params["w1"], params["b1"]
    w2, b2 = params["w2"], params["b2"]
    w3, b3 = params["w3"], params["b3"]

    # Batch tile: multiple of 128 (lane width). Large tiles amortize per-step
    # overhead; even 8192 is only ~1.1 MB of x, far under every VMEM budget.
    tile_b = max(128, (tile_b // 128) * 128)
    n_tiles = pl.cdiv(B, tile_b)
    bp = n_tiles * tile_b

    # Feature-major transpose + zero-pad ragged tail (padding sliced off below).
    xt = jnp.zeros((F, bp), compute_dtype).at[:, :B].set(x.T.astype(compute_dtype))

    wd = lambda a: a.astype(compute_dtype)    # MXU operands (optionally bf16)
    f32 = lambda a: a.astype(jnp.float32)     # biases / epilogue math stay f32

    # Weights/biases: full-array blocks with a constant index_map -> resident
    # in VMEM across all batch tiles (single DMA each).
    def resident(a):
        return pl.BlockSpec(a.shape, lambda i: (0,) * a.ndim)

    out = pl.pallas_call(
        mlp_kernel,
        out_shape=jax.ShapeDtypeStruct((1, bp), jnp.float32),
        grid=(n_tiles,),
        in_specs=[
            pl.BlockSpec((F, tile_b), lambda i: (0, i)),   # streamed x tile
            resident(w1), resident(b1),
            resident(w2), resident(b2),
            resident(w3), resident(b3),
        ],
        out_specs=pl.BlockSpec((1, tile_b), lambda i: (0, i)),  # lane-dense store
        compiler_params=pltpu.CompilerParams(
            dimension_semantics=("parallel",)),
    )(xt, wd(w1), f32(b1), wd(w2), f32(b2), wd(w3), f32(b3))

    return out[:, :B].T  # back to [B, 1]


def init_params(key, n_inputs=34):
    """Shapes/semantics of the PyTorch module: weight (out, in), bias (out, 1).

    kaiming/xavier uniform bounds mimic torch defaults; exact RNG streams are
    not required, only the forward-pass semantics.
    """
    ks = jax.random.split(key, 6)

    def kaiming_uniform(k, fan_out, fan_in):
        bound = jnp.sqrt(2.0) * jnp.sqrt(3.0 / fan_in)  # relu gain
        return jax.random.uniform(k, (fan_out, fan_in), jnp.float32, -bound, bound)

    def xavier_uniform(k, fan_out, fan_in):
        bound = jnp.sqrt(6.0 / (fan_in + fan_out))
        return jax.random.uniform(k, (fan_out, fan_in), jnp.float32, -bound, bound)

    def bias_uniform(k, fan_out, fan_in):
        bound = 1.0 / jnp.sqrt(float(fan_in))
        return jax.random.uniform(k, (fan_out, 1), jnp.float32, -bound, bound)

    return {
        "w1": kaiming_uniform(ks[0], 10, n_inputs),
        "b1": bias_uniform(ks[1], 10, n_inputs),
        "w2": kaiming_uniform(ks[2], 8, 10),
        "b2": bias_uniform(ks[3], 8, 10),
        "w3": xavier_uniform(ks[4], 1, 8),
        "b3": bias_uniform(ks[5], 1, 8),
    }


def mlp_reference(x, p):
    h1 = jnp.maximum(x @ p["w1"].T + p["b1"].T, 0.0)
    h2 = jnp.maximum(h1 @ p["w2"].T + p["b2"].T, 0.0)
    return jax.nn.sigmoid(h2 @ p["w3"].T + p["b3"].T)


if __name__ == "__main__":
    key = jax.random.PRNGKey(0)
    kx, kp = jax.random.split(key)

    n_inputs = 34              # ionosphere dataset: 34 features
    B = 300                    # deliberately NOT a tile multiple (tests padding)
    x = jax.random.normal(kx, (B, n_inputs), jnp.float32)
    params = init_params(kp, n_inputs)

    # f32 path (strict check) — small tile so the demo exercises >1 grid step.
    out = jax.block_until_ready(mlp_forward(x, params, tile_b=128))
    ref = mlp_reference(x, params)
    assert out.shape == (B, 1)
    assert jnp.allclose(out, ref, atol=1e-5, rtol=1e-5), "f32 mismatch vs reference"

    # bf16 MXU-operand path (halves the HBM x stream on v6e/v7x), f32 epilogue.
    out_bf16 = jax.block_until_ready(
        mlp_forward(x, params, tile_b=128, compute_dtype=jnp.bfloat16))
    assert out_bf16.shape == (B, 1)
    assert jnp.allclose(out_bf16, ref, atol=3e-2, rtol=3e-2), "bf16 mismatch vs reference"

    print("KERNEL_OK")
</pallas_src>

<mosaic_0001>
module attributes {stable_mosaic.version = 11 : i64} {
  func.func @mlp_kernel(%arg0: i32, %arg1: memref<34x128xf32, #tpu.memory_space<vmem>>, %arg2: memref<10x34xf32, #tpu.memory_space<vmem>>, %arg3: memref<10x1xf32, #tpu.memory_space<vmem>>, %arg4: memref<8x10xf32, #tpu.memory_space<vmem>>, %arg5: memref<8x1xf32, #tpu.memory_space<vmem>>, %arg6: memref<1x8xf32, #tpu.memory_space<vmem>>, %arg7: memref<1x1xf32, #tpu.memory_space<vmem>>, %arg8: memref<1x128xf32, #tpu.memory_space<vmem>>) attributes {dimension_semantics = [#tpu.dimension_semantics<parallel>], iteration_bounds = array<i64: 3>, scalar_prefetch = 0 : i64, scratch_operands = 0 : i64, tpu.core_type = #tpu.core_type<tc>, window_params = [{transform_indices = @transform_0, window_bounds = array<i64: 34, 128>}, {pipeline_mode = #tpu.pipeline_mode<synchronous>, transform_indices = @transform_1, window_bounds = array<i64: 10, 34>}, {pipeline_mode = #tpu.pipeline_mode<synchronous>, transform_indices = @transform_2, window_bounds = array<i64: 10, 1>}, {pipeline_mode = #tpu.pipeline_mode<synchronous>, transform_indices = @transform_3, window_bounds = array<i64: 8, 10>}, {pipeline_mode = #tpu.pipeline_mode<synchronous>, transform_indices = @transform_4, window_bounds = array<i64: 8, 1>}, {pipeline_mode = #tpu.pipeline_mode<synchronous>, transform_indices = @transform_5, window_bounds = array<i64: 1, 8>}, {pipeline_mode = #tpu.pipeline_mode<synchronous>, transform_indices = @transform_6, window_bounds = array<i64: 1, 1>}, {transform_indices = @transform_7, window_bounds = array<i64: 1, 128>}]} {
    %c0 = arith.constant 0 : index
    %c0_0 = arith.constant 0 : index
    %0 = vector.load %arg1[%c0, %c0_0] : memref<34x128xf32, #tpu.memory_space<vmem>>, vector<34x128xf32>
    %c0_1 = arith.constant 0 : index
    %c0_2 = arith.constant 0 : index
    %1 = vector.load %arg2[%c0_1, %c0_2] : memref<10x34xf32, #tpu.memory_space<vmem>>, vector<10x34xf32>
    %cst = arith.constant dense<0.000000e+00> : vector<10x128xf32>
    %2 = tpu.matmul %1, %0, %cst {dimension_numbers = #tpu.dot_dimension_numbers<[1], [0], [0], [1], [0, 0, 1, 1], [], []>} : vector<10x34xf32>, vector<34x128xf32>, vector<10x128xf32> -> vector<10x128xf32>
    %c0_3 = arith.constant 0 : index
    %c0_4 = arith.constant 0 : index
    %3 = vector.load %arg3[%c0_3, %c0_4] : memref<10x1xf32, #tpu.memory_space<vmem>>, vector<10x1xf32>
    %4 = vector.broadcast %3 : vector<10x1xf32> to vector<10x128xf32>
    %5 = arith.addf %2, %4 : vector<10x128xf32>
    %cst_5 = arith.constant 0.000000e+00 : f32
    %6 = vector.broadcast %cst_5 : f32 to vector<10x128xf32>
    %7 = arith.maximumf %5, %6 : vector<10x128xf32>
    %c0_6 = arith.constant 0 : index
    %c0_7 = arith.constant 0 : index
    %8 = vector.load %arg4[%c0_6, %c0_7] : memref<8x10xf32, #tpu.memory_space<vmem>>, vector<8x10xf32>
    %cst_8 = arith.constant dense<0.000000e+00> : vector<8x128xf32>
    %9 = tpu.matmul %8, %7, %cst_8 {dimension_numbers = #tpu.dot_dimension_numbers<[1], [0], [0], [1], [0, 0, 1, 1], [], []>} : vector<8x10xf32>, vector<10x128xf32>, vector<8x128xf32> -> vector<8x128xf32>
    %c0_9 = arith.constant 0 : index
    %c0_10 = arith.constant 0 : index
    %10 = vector.load %arg5[%c0_9, %c0_10] : memref<8x1xf32, #tpu.memory_space<vmem>>, vector<8x1xf32>
    %11 = vector.broadcast %10 : vector<8x1xf32> to vector<8x128xf32>
    %12 = arith.addf %9, %11 : vector<8x128xf32>
    %cst_11 = arith.constant 0.000000e+00 : f32
    %13 = vector.broadcast %cst_11 : f32 to vector<8x128xf32>
    %14 = arith.maximumf %12, %13 : vector<8x128xf32>
    %c0_12 = arith.constant 0 : index
    %c0_13 = arith.constant 0 : index
    %15 = vector.load %arg6[%c0_12, %c0_13] : memref<1x8xf32, #tpu.memory_space<vmem>>, vector<1x8xf32>
    %cst_14 = arith.constant dense<0.000000e+00> : vector<1x128xf32>
    %16 = tpu.matmul %15, %14, %cst_14 {dimension_numbers = #tpu.dot_dimension_numbers<[1], [0], [0], [1], [0, 0, 1, 1], [], []>} : vector<1x8xf32>, vector<8x128xf32>, vector<1x128xf32> -> vector<1x128xf32>
    %c0_15 = arith.constant 0 : index
    %c0_16 = arith.constant 0 : index
    %17 = vector.load %arg7[%c0_15, %c0_16] : memref<1x1xf32, #tpu.memory_space<vmem>>, vector<1x1xf32>
    %18 = vector.broadcast %17 : vector<1x1xf32> to vector<1x128xf32>
    %19 = arith.addf %16, %18 : vector<1x128xf32>
    %cst_17 = arith.constant 0.000000e+00 : f32
    %20 = vector.broadcast %cst_17 : f32 to vector<1x128xf32>
    %21 = arith.subf %20, %19 : vector<1x128xf32>
    %22 = math.exp %21 : vector<1x128xf32>
    %cst_18 = arith.constant 1.000000e+00 : f32
    %23 = vector.broadcast %cst_18 : f32 to vector<1x128xf32>
    %24 = arith.addf %23, %22 : vector<1x128xf32>
    %25 = tpu.reciprocal %24 : vector<1x128xf32> -> vector<1x128xf32>
    %c0_19 = arith.constant 0 : index
    %c0_20 = arith.constant 0 : index
    %26 = vector.load %arg8[%c0_19, %c0_20] : memref<1x128xf32, #tpu.memory_space<vmem>>, vector<1x128xf32>
    tpu.vector_store %arg8[%c0_19, %c0_20], %25 {strides = array<i32>} : memref<1x128xf32, #tpu.memory_space<vmem>>, vector<1x128xf32>,
    return
  }
  func.func @transform_0(%arg0: i32) -> (i32, i32) {
    %c0_i32 = arith.constant 0 : i32
    %c0_i32_0 = arith.constant 0 : i32
    return %c0_i32, %arg0 : i32, i32
  }
  func.func @transform_1(%arg0: i32) -> (i32, i32) {
    %c0_i32 = arith.constant 0 : i32
    %c0_i32_0 = arith.constant 0 : i32
    %c0_i32_1 = arith.constant 0 : i32
    return %c0_i32, %c0_i32_0 : i32, i32
  }
  func.func @transform_2(%arg0: i32) -> (i32, i32) {
    %c0_i32 = arith.constant 0 : i32
    %c0_i32_0 = arith.constant 0 : i32
    %c0_i32_1 = arith.constant 0 : i32
    return %c0_i32, %c0_i32_0 : i32, i32
  }
  func.func @transform_3(%arg0: i32) -> (i32, i32) {
    %c0_i32 = arith.constant 0 : i32
    %c0_i32_0 = arith.constant 0 : i32
    %c0_i32_1 = arith.constant 0 : i32
    return %c0_i32, %c0_i32_0 : i32, i32
  }
  func.func @transform_4(%arg0: i32) -> (i32, i32) {
    %c0_i32 = arith.constant 0 : i32
    %c0_i32_0 = arith.constant 0 : i32
    %c0_i32_1 = arith.constant 0 : i32
    return %c0_i32, %c0_i32_0 : i32, i32
  }
  func.func @transform_5(%arg0: i32) -> (i32, i32) {
    %c0_i32 = arith.constant 0 : i32
    %c0_i32_0 = arith.constant 0 : i32
    %c0_i32_1 = arith.constant 0 : i32
    return %c0_i32, %c0_i32_0 : i32, i32
  }
  func.func @transform_6(%arg0: i32) -> (i32, i32) {
    %c0_i32 = arith.constant 0 : i32
    %c0_i32_0 = arith.constant 0 : i32
    %c0_i32_1 = arith.constant 0 : i32
    return %c0_i32, %c0_i32_0 : i32, i32
  }
  func.func @transform_7(%arg0: i32) -> (i32, i32) {
    %c0_i32 = arith.constant 0 : i32
    %c0_i32_0 = arith.constant 0 : i32
    return %c0_i32, %arg0 : i32, i32
  }
}

</mosaic_0001>

<llo_original>
// kernel: tpu_custom_call.1
$region0: #{tpu_custom_call.1}
  #allocation0 [shape = 'u32[]', space=smem, size = 0x4, offset = 0x4, fixed_abs, tag = 'smem constant byte address 0x4 - core index']
  #allocation1 [shape = 'u32[144,128]{1,0:T(1,128)}', space=vmem, size = 0x12000, scoped, tag = 'internal scratch']
  #allocation2 [shape = 'f32[1,1]{1,0:T(1,128)S(1)}', space=vmem, size = 0x200, scoped, tag = 'scoped memory for tpu_custom_call.1']
  %s0 = inlined_call_operand.hbm [shape: f32[34,384], index: 0, kind: input, shape index: {}]
  %s1 = inlined_call_operand.vmem [shape: f32[10,34], index: 1, kind: input, shape index: {}]
  %s2 = inlined_call_operand.vmem [shape: f32[10,1], index: 2, kind: input, shape index: {}]
  %s3 = inlined_call_operand.vmem [shape: f32[8,10], index: 3, kind: input, shape index: {}]
  %s4 = inlined_call_operand.vmem [shape: f32[8,1], index: 4, kind: input, shape index: {}]
  %s5 = inlined_call_operand.vmem [shape: f32[1,8], index: 5, kind: input, shape index: {}]
  %s6 = inlined_call_operand.<no memory space> [shape: f32[1,1], index: 6, kind: input, shape index: {}]
  %s7 = inlined_call_operand.hbm [shape: f32[1,384], index: 7, kind: output, shape index: {}]
  %s8 = sld [smem:[#allocation0]]
  $region65: #{tpu_custom_call.1} parent=0
    _
  %s10 = ssub.s32 1, %s8
  %s11 = scalar_select 0, %s10, %s8
  %v12 = vstv %s6
  %13 = vst [vmem:[#allocation2] sm:$0x1] %v12
  $region1: #{tpu_custom_call.1} parent=0
    #allocation3 [shape = 'u8[40960]{0}', space=vmem, size = 0xa000, scoped, tag = 'input window, operand 0']
    #allocation4 [shape = 's32[2]{0}', space=sflag, size = 0x8, scoped, tag = 'scoped memory for tpu_custom_call.1']
    #allocation5 [shape = 's32[2]{0}', space=sflag, size = 0x8, scoped, tag = 'scoped memory for tpu_custom_call.1']
    #allocation6 [shape = 'u8[1024]{0}', space=vmem, size = 0x400, scoped, tag = 'output window, operand 0']
    %14 = vsyncpa [#allocation4], 0
    %s15 = scalar_lea.sflag [#allocation4], 1
    %16 = vsyncpa %s15, 0
    %17 = vsyncpa [#allocation5], 0
    %s18 = scalar_lea.sflag [#allocation5], 1
    %19 = vsyncpa %s18, 0
    loop: start=0, step=1, limit=5
    $region2: #{tpu_custom_call.1} parent=1 // loop_pre_header
      _
    $region3: #{tpu_custom_call.1} parent=1 // loop_header
      %s21 = sphi 0, %s25
      %p22 = scmp.ge.s32.totalorder %s21, 5
      %s31 = sphi 0, %s33
      %s34 = sphi 0, %s31
      %s35 = sphi 0, %s34
      %s51 = sphi 0, %s35
      %s55 = sphi 0, %s55
      %s57 = sphi 0, %s55
      %s58 = sphi 0, %s57
      %s72 = sphi 0, %s58
      %s76 = sphi 0, %s76
      %s78 = sphi 0, %s76
      %s79 = sphi 0, %s78
      %s93 = sphi 0, %s79
      %s97 = sphi 0, %s97
      %s99 = sphi 0, %s97
      %s100 = sphi 0, %s99
      %s114 = sphi 0, %s100
      %s118 = sphi 0, %s118
      %s120 = sphi 0, %s118
      %s121 = sphi 0, %s120
      %s135 = sphi 0, %s121
      %s139 = sphi 0, %s139
      %s141 = sphi 0, %s139
      %s142 = sphi 0, %s141
      %s156 = sphi 0, %s142
      %s160 = sphi 0, %s160
      %s162 = sphi 0, %s160
      %s163 = sphi 0, %s162
      %s177 = sphi 0, %s163
      %s183 = sphi 0, %s185
      %s186 = sphi 0, %s183
      %s187 = sphi 0, %s186
      %s203 = sphi 0, %s187
    $region4: #{tpu_custom_call.1} parent=1 // loop_header_branch
      %24 = sbr.rel (%p22) target = $region8
    $region5: #{tpu_custom_call.1} parent=1 // loop_body
      %s26 = ssub.s32 %s21, 1
      %s27 = ssub.s32 %s21, 2
      %s28 = sadd.s32 %s21, 1
      %s29 = ssub.s32 %s21, %s28
      %p30 = scmp.eq.s32.totalorder %s29, 0
      %s32 = sadd.s32 %s31, 1
      %s33 = scalar_select %p30, %s31, %s32
      %p36 = pneg %p30
      %p37 = scmp.eq.s32.totalorder %s21, 2
      %p38 = por %p36, %p37
      %p39 = scmp.ne.s32.totalorder %s31, %s34
      %p40 = scmp.eq.s32.totalorder %s21, 0
      %p41 = por %p39, %p40
      %p42 = scmp.ne.s32.totalorder %s31, %s34
      %p43 = scmp.eq.s32.totalorder %s26, 2
      %p44 = por %p42, %p43
      %p45 = scmp.ne.s32.totalorder %s34, %s35
      %p46 = scmp.eq.s32.totalorder %s26, 0
      %p47 = por %p45, %p46
      %p48 = scmp.ne.s32.totalorder %s34, %s35
      %p49 = scmp.eq.s32.totalorder %s27, 2
      %p50 = por %p48, %p49
      %p52 = scmp.ne.s32.totalorder %s35, %s51
      %p53 = scmp.eq.s32.totalorder %s27, 0
      %p54 = por %p52, %p53
      %s56 = sadd.s32 %s55, 1
      %p59 = scmp.eq.s32.totalorder %s21, 2
      %p60 = scmp.ne.s32.totalorder %s55, %s57
      %p61 = scmp.eq.s32.totalorder %s21, 0
      %p62 = por %p60, %p61
      %p63 = scmp.ne.s32.totalorder %s55, %s57
      %p64 = scmp.eq.s32.totalorder %s26, 2
      %p65 = por %p63, %p64
      %p66 = scmp.ne.s32.totalorder %s57, %s58
      %p67 = scmp.eq.s32.totalorder %s26, 0
      %p68 = por %p66, %p67
      %p69 = scmp.ne.s32.totalorder %s57, %s58
      %p70 = scmp.eq.s32.totalorder %s27, 2
      %p71 = por %p69, %p70
      %p73 = scmp.ne.s32.totalorder %s58, %s72
      %p74 = scmp.eq.s32.totalorder %s27, 0
      %p75 = por %p73, %p74
      %s77 = sadd.s32 %s76, 1
      %p80 = scmp.eq.s32.totalorder %s21, 2
      %p81 = scmp.ne.s32.totalorder %s76, %s78
      %p82 = scmp.eq.s32.totalorder %s21, 0
      %p83 = por %p81, %p82
      %p84 = scmp.ne.s32.totalorder %s76, %s78
      %p85 = scmp.eq.s32.totalorder %s26, 2
      %p86 = por %p84, %p85
      %p87 = scmp.ne.s32.totalorder %s78, %s79
      %p88 = scmp.eq.s32.totalorder %s26, 0
      %p89 = por %p87, %p88
      %p90 = scmp.ne.s32.totalorder %s78, %s79
      %p91 = scmp.eq.s32.totalorder %s27, 2
      %p92 = por %p90, %p91
      %p94 = scmp.ne.s32.totalorder %s79, %s93
      %p95 = scmp.eq.s32.totalorder %s27, 0
      %p96 = por %p94, %p95
      %s98 = sadd.s32 %s97, 1
      %p101 = scmp.eq.s32.totalorder %s21, 2
      %p102 = scmp.ne.s32.totalorder %s97, %s99
      %p103 = scmp.eq.s32.totalorder %s21, 0
      %p104 = por %p102, %p103
      %p105 = scmp.ne.s32.totalorder %s97, %s99
      %p106 = scmp.eq.s32.totalorder %s26, 2
      %p107 = por %p105, %p106
      %p108 = scmp.ne.s32.totalorder %s99, %s100
      %p109 = scmp.eq.s32.totalorder %s26, 0
      %p110 = por %p108, %p109
      %p111 = scmp.ne.s32.totalorder %s99, %s100
      %p112 = scmp.eq.s32.totalorder %s27, 2
      %p113 = por %p111, %p112
      %p115 = scmp.ne.s32.totalorder %s100, %s114
      %p116 = scmp.eq.s32.totalorder %s27, 0
      %p117 = por %p115, %p116
      %s119 = sadd.s32 %s118, 1
      %p122 = scmp.eq.s32.totalorder %s21, 2
      %p123 = scmp.ne.s32.totalorder %s118, %s120
      %p124 = scmp.eq.s32.totalorder %s21, 0
      %p125 = por %p123, %p124
      %p126 = scmp.ne.s32.totalorder %s118, %s120
      %p127 = scmp.eq.s32.totalorder %s26, 2
      %p128 = por %p126, %p127
      %p129 = scmp.ne.s32.totalorder %s120, %s121
      %p130 = scmp.eq.s32.totalorder %s26, 0
      %p131 = por %p129, %p130
      %p132 = scmp.ne.s32.totalorder %s120, %s121
      %p133 = scmp.eq.s32.totalorder %s27, 2
      %p134 = por %p132, %p133
      %p136 = scmp.ne.s32.totalorder %s121, %s135
      %p137 = scmp.eq.s32.totalorder %s27, 0
      %p138 = por %p136, %p137
      %s140 = sadd.s32 %s139, 1
      %p143 = scmp.eq.s32.totalorder %s21, 2
      %p144 = scmp.ne.s32.totalorder %s139, %s141
      %p145 = scmp.eq.s32.totalorder %s21, 0
      %p146 = por %p144, %p145
      %p147 = scmp.ne.s32.totalorder %s139, %s141
      %p148 = scmp.eq.s32.totalorder %s26, 2
      %p149 = por %p147, %p148
      %p150 = scmp.ne.s32.totalorder %s141, %s142
      %p151 = scmp.eq.s32.totalorder %s26, 0
      %p152 = por %p150, %p151
      %p153 = scmp.ne.s32.totalorder %s141, %s142
      %p154 = scmp.eq.s32.totalorder %s27, 2
      %p155 = por %p153, %p154
      %p157 = scmp.ne.s32.totalorder %s142, %s156
      %p158 = scmp.eq.s32.totalorder %s27, 0
      %p159 = por %p157, %p158
      %s161 = sadd.s32 %s160, 1
      %p164 = scmp.eq.s32.totalorder %s21, 2
      %p165 = scmp.ne.s32.totalorder %s160, %s162
      %p166 = scmp.eq.s32.totalorder %s21, 0
      %p167 = por %p165, %p166
      %p168 = scmp.ne.s32.totalorder %s160, %s162
      %p169 = scmp.eq.s32.totalorder %s26, 2
      %p170 = por %p168, %p169
      %p171 = scmp.ne.s32.totalorder %s162, %s163
      %p172 = scmp.eq.s32.totalorder %s26, 0
      %p173 = por %p171, %p172
      %p174 = scmp.ne.s32.totalorder %s162, %s163
      %p175 = scmp.eq.s32.totalorder %s27, 2
      %p176 = por %p174, %p175
      %p178 = scmp.ne.s32.totalorder %s163, %s177
      %p179 = scmp.eq.s32.totalorder %s27, 0
      %p180 = por %p178, %p179
      %s181 = ssub.s32 %s21, %s28
      %p182 = scmp.eq.s32.totalorder %s181, 0
      %s184 = sadd.s32 %s183, 1
      %s185 = scalar_select %p182, %s183, %s184
      %p188 = pneg %p182
      %p189 = scmp.eq.s32.totalorder %s21, 2
      %p190 = por %p188, %p189
      %p191 = scmp.ne.s32.totalorder %s183, %s186
      %p192 = scmp.eq.s32.totalorder %s21, 0
      %p193 = por %p191, %p192
      %p194 = scmp.ne.s32.totalorder %s183, %s186
      %p195 = scmp.eq.s32.totalorder %s26, 2
      %p196 = por %p194, %p195
      %p197 = scmp.ne.s32.totalorder %s186, %s187
      %p198 = scmp.eq.s32.totalorder %s26, 0
      %p199 = por %p197, %p198
      %p200 = scmp.ne.s32.totalorder %s186, %s187
      %p201 = scmp.eq.s32.totalorder %s27, 2
      %p202 = por %p200, %p201
      %p204 = scmp.ne.s32.totalorder %s187, %s203
      %p205 = scmp.eq.s32.totalorder %s27, 0
      %p206 = por %p204, %p205
      %p207 = scmp.le.s32.totalorder 1, %s21
      %p208 = scmp.lt.s32.totalorder %s21, 4
      %p209 = pnand %p207, %p208
      %p210 = pneg %p209
      // Predicated region
      $region9: #{tpu_custom_call.1} parent=5 // pred_check
        _
      $region10: #{tpu_custom_call.1} parent=5 // pred_check_branch
        %212 = sbr.rel (%p209) target = $region12
      $region11: #{tpu_custom_call.1} parent=5 // pred_region
        %s213 = ssub.s32 %s21, 1
        // Predicated region
        $region13: #{tpu_custom_call.1} parent=11 // pred_check
          %p214 = pneg %p68
        $region14: #{tpu_custom_call.1} parent=11 // pred_check_branch
          %216 = sbr.rel (%p214) target = $region16
        $region15: #{tpu_custom_call.1} parent=11 // pred_region
          _
        $region16: #{tpu_custom_call.1} parent=11 // pred_fallthru
          _
        // Predicated region
        $region17: #{tpu_custom_call.1} parent=11 // pred_check
          %p217 = pneg %p89
        $region18: #{tpu_custom_call.1} parent=11 // pred_check_branch
          %219 = sbr.rel (%p217) target = $region20
        $region19: #{tpu_custom_call.1} parent=11 // pred_region
          _
        $region20: #{tpu_custom_call.1} parent=11 // pred_fallthru
          _
        // Predicated region
        $region21: #{tpu_custom_call.1} parent=11 // pred_check
          %p220 = pneg %p110
        $region22: #{tpu_custom_call.1} parent=11 // pred_check_branch
          %222 = sbr.rel (%p220) target = $region24
        $region23: #{tpu_custom_call.1} parent=11 // pred_region
          _
        $region24: #{tpu_custom_call.1} parent=11 // pred_fallthru
          _
        // Predicated region
        $region25: #{tpu_custom_call.1} parent=11 // pred_check
          %p223 = pneg %p131
        $region26: #{tpu_custom_call.1} parent=11 // pred_check_branch
          %225 = sbr.rel (%p223) target = $region28
        $region27: #{tpu_custom_call.1} parent=11 // pred_region
          _
        $region28: #{tpu_custom_call.1} parent=11 // pred_fallthru
          _
        // Predicated region
        $region29: #{tpu_custom_call.1} parent=11 // pred_check
          %p226 = pneg %p152
        $region30: #{tpu_custom_call.1} parent=11 // pred_check_branch
          %228 = sbr.rel (%p226) target = $region32
        $region31: #{tpu_custom_call.1} parent=11 // pred_region
          _
        $region32: #{tpu_custom_call.1} parent=11 // pred_fallthru
          _
        // Predicated region
        $region33: #{tpu_custom_call.1} parent=11 // pred_check
          %p229 = pneg %p173
        $region34: #{tpu_custom_call.1} parent=11 // pred_check_branch
          %231 = sbr.rel (%p229) target = $region36
        $region35: #{tpu_custom_call.1} parent=11 // pred_region
          _
        $region36: #{tpu_custom_call.1} parent=11 // pred_fallthru
          _
      $region12: #{tpu_custom_call.1} parent=5 // pred_fallthru
        _
      %p232 = scmp.lt.s32.totalorder %s21, 3
      // Predicated region
      $region37: #{tpu_custom_call.1} parent=5 // pred_check
        %p233 = pneg %p232
      $region38: #{tpu_custom_call.1} parent=5 // pred_check_branch
        %235 = sbr.rel (%p233) target = $region40
      $region39: #{tpu_custom_call.1} parent=5 // pred_region
        // Predicated region
        $region41: #{tpu_custom_call.1} parent=39 // pred_check
          %p236 = pneg %p41
        $region42: #{tpu_custom_call.1} parent=39 // pred_check_branch
          %238 = sbr.rel (%p236) target = $region44
        $region43: #{tpu_custom_call.1} parent=39 // pred_region
          %s239 = sand.u32 %s31, 1
          %s240 = scalar_lea.sflag [#allocation4], %s239
          %s241 = sand.u32 %s31, 1
          %s242 = smul.addr %s241, 40
          %s243 = scalar_lea.vmem [#allocation3], %s242
          %s245 = ssub.s32 640, 640
          %246 = vsyncadd %s240, %s245
          %s247 = smul.addr %s21, 128
          %s248 = scalar_lea.hbm %s0, %s247
          %s249 = sshll.u32 %s243, 4
          %s250 = int_to_ptr.vmem [resolvable:$true] %s249
          %255 = dma.hbm_to_vmem [thread:$0]  %s248, 640, %s250, %s240, 384, 128, 8
        $region44: #{tpu_custom_call.1} parent=39 // pred_fallthru
          _
      $region40: #{tpu_custom_call.1} parent=5 // pred_fallthru
        _
      %p256 = scmp.le.s32.totalorder 1, %s21
      %p257 = scmp.lt.s32.totalorder %s21, 4
      %p258 = pnand %p256, %p257
      %p259 = pneg %p258
      // Predicated region
      $region45: #{tpu_custom_call.1} parent=5 // pred_check
        _
      $region46: #{tpu_custom_call.1} parent=5 // pred_check_branch
        %261 = sbr.rel (%p258) target = $region48
      $region47: #{tpu_custom_call.1} parent=5 // pred_region
        %s262 = ssub.s32 %s21, 1
        %s263 = sand.u32 %s34, 1
        %s264 = scalar_lea.sflag [#allocation4], %s263
        %s265 = sand.u32 %s34, 1
        %s266 = smul.addr %s265, 40
        %s267 = scalar_lea.vmem [#allocation3], %s266
        // Predicated region
        $region49: #{tpu_custom_call.1} parent=47 // pred_check
          %p268 = pneg %p47
        $region50: #{tpu_custom_call.1} parent=47 // pred_check_branch
          %270 = sbr.rel (%p268) target = $region52
        $region51: #{tpu_custom_call.1} parent=47 // pred_region
          %271 = dma.done %s264, 640
        $region52: #{tpu_custom_call.1} parent=47 // pred_fallthru
          _
        %s272 = sand.u32 %s34, 1
        %s273 = scalar_lea.sflag [#allocation4], %s272
        %s274 = sand.u32 %s34, 1
        %s275 = smul.addr %s274, 40
        %s276 = scalar_lea.vmem [#allocation3], %s275
        %p277 = pneg %p47
        %p278 = pneg %p44
        %p279 = pneg %p68
        %p280 = pneg %p65
        %p281 = pneg %p89
        %p282 = pneg %p86
        %p283 = pneg %p110
        %p284 = pneg %p107
        %p285 = pneg %p131
        %p286 = pneg %p128
        %p287 = pneg %p152
        %p288 = pneg %p149
        %p289 = pneg %p173
        %p290 = pneg %p170
        %p291 = pneg %p199
        %p292 = pneg %p196
        %s293 = sand.u32 %s186, 1
        %s294 = scalar_lea.sflag [#allocation5], %s293
        %s295 = sand.u32 %s186, 1
        %s296 = scalar_lea.vmem [#allocation6], %s295
        %v297 = vld [vmem:[%s267] sm:$0xff]
        %v298 = vld [vmem:[%s267 + $0x8] sm:$0xff]
        %v299 = vld [vmem:[%s267 + $0x10] sm:$0xff]
        %v300 = vld [vmem:[%s267 + $0x18] sm:$0xff]
        %v301 = vld [vmem:[%s267 + $0x20] sm:$0x3]
        %v302 = vld [vmem:[%s1] sm:$0xff]
        %v303 = vld [vmem:[%s1 + $0x8] sm:$0x3]
        %v304 = vld [vmem:[%s2] sm:$0xff]
        %v305 = vld [vmem:[%s2 + $0x8] sm:$0x3]
        %307 = vset.pattern.permute.xlu0 0
        %308 = vperm.xlu0 %307, %v304
        %v309 = vpop.permute.xlu0 %308
        %312 = vset.pattern.permute.xlu0 0
        %313 = vperm.xlu0 %312, %v305
        %v314 = vpop.permute.xlu0 %313
        %vm316 = vcmask 277504
        %v318 = vsel %vm316, %v302, 0
        %v321 = vsel %vm316, %v303, 0
        %vm323 = vcmask 1041408
        %v325 = vsel %vm323, %v301, 0
        %327 = vmatprep.subr.mxu0 0.0
        %328 = vmatpush1.msra.mxu0 %v297
        %329 = vmatprep.subr.mxu0 0.0
        %330 = vmatpush1.msra.mxu0 %v298
        %331 = vmatprep.subr.mxu0 0.0
        %332 = vmatpush1.msra.mxu0 %v299
        %333 = vmatprep.subr.mxu0 0.0
        %334 = vmatpush1.msra.mxu0 %v300
        %335 = vmatprep.subr.mxu0 0.0
        %336 = vmatpush1.msra.mxu0 %v325
        %337 = vmatprep.subr.mxu0 0.0
        %338 = vmatpush1.msra.mxu0 0.0
        %339 = vmatprep.subr.mxu0 0.0
        %340 = vmatpush1.msra.mxu0 0.0
        %341 = vmatprep.subr.mxu0 0.0
        %342 = vmatpush1.msra.mxu0 0.0
        %343 = vmatprep.subr.mxu0 0.0
        %344 = vmatpush1.msra.mxu0 0.0
        %345 = vmatprep.subr.mxu0 0.0
        %346 = vmatpush1.msra.mxu0 0.0
        %347 = vmatprep.subr.mxu0 0.0
        %348 = vmatpush1.msra.mxu0 0.0
        %349 = vmatprep.subr.mxu0 0.0
        %350 = vmatpush1.msra.mxu0 0.0
        %351 = vmatprep.subr.mxu0 0.0
        %352 = vmatpush1.msra.mxu0 0.0
        %353 = vmatprep.subr.mxu0 0.0
        %354 = vmatpush1.msra.mxu0 0.0
        %355 = vmatprep.subr.mxu0 0.0
        %356 = vmatpush1.msra.mxu0 0.0
        %357 = vmatprep.subr.mxu0 0.0
        %358 = vmatpush1.msra.mxu0 0.0
        %359 = vmatprep.subr.mxu0 0.0
        %360 = vmatpush1.msra.mxu0 0.0
        %361 = vmatprep.subr.mxu0 0.0
        %362 = vmatpush1.msra.mxu0 0.0
        %363 = vmatprep.subr.mxu0 0.0
        %364 = vmatpush1.msra.mxu0 0.0
        %365 = vmatprep.subr.mxu0 0.0
        %366 = vmatpush1.msra.mxu0 0.0
        %367 = vmatprep.subr.mxu0 0.0
        %368 = vmatpush1.msra.mxu0 0.0
        %369 = vmatprep.subr.mxu0 0.0
        %370 = vmatpush1.msra.mxu0 0.0
        %371 = vmatprep.subr.mxu0 0.0
        %372 = vmatpush1.msra.mxu0 0.0
        %373 = vmatprep.subr.mxu0 0.0
        %374 = vmatpush1.msra.mxu0 0.0
        %375 = vmatprep.subr.mxu0 0.0
        %376 = vmatpush1.msra.mxu0 0.0
        %377 = vmatprep.subr.mxu0 0.0
        %378 = vmatpush1.msra.mxu0 0.0
        %379 = vmatprep.subr.mxu0 0.0
        %380 = vmatpush1.msra.mxu0 0.0
        %381 = vmatprep.subr.mxu0 0.0
        %382 = vmatpush1.msra.mxu0 0.0
        %383 = vmatprep.subr.mxu0 0.0
        %384 = vmatpush1.msra.mxu0 0.0
        %385 = vmatprep.subr.mxu0 0.0
        %386 = vmatpush1.msra.mxu0 0.0
        %387 = vmatprep.subr.mxu0 0.0
        %388 = vmatpush1.msra.mxu0 0.0
        %389 = vmatprep.subr.mxu0 0.0
        %390 = vmatpush1.msra.mxu0 0.0
        %391 = vmatprep.mubr.f32.mxu0 0.0
        %392 = vmatmul.mubr.f32.gmra.mrb[0].mxu0 %v318
        %v393 = vpop.f32.mrb[0].mxu0
        %v394 = vadd.f32 %v309, %v393
        %v395 = vpop.f32.mrb[0].mxu0
        %396 = vmatprep.mubr.f32.mxu0 0.0
        %397 = vmatmul.mubr.f32.gmra.mrb[0].mxu0 %v321
        %v398 = vpop.f32.mrb[0].mxu0
        %v399 = vadd.f32 %v314, %v398
        %v400 = vpop.f32.mrb[0].mxu0
        %401 = vdwg.mxu0
        %v402 = vmax.f32 %v394, 0.0
        %v403 = vmax.f32 %v399, 0.0
        %v404 = vld [vmem:[%s3] sm:$0xff]
        %v405 = vld [vmem:[%s4] sm:$0xff]
        %407 = vset.pattern.permute.xlu0 0
        %408 = vperm.xlu0 %407, %v405
        %v409 = vpop.permute.xlu0 %408
        %vm411 = vcmask 80896
        %v413 = vsel %vm411, %v404, 0
        %v416 = vsel %vm323, %v403, 0
        %418 = vmatprep.subr.mxu0 0.0
        %419 = vmatpush1.msra.mxu0 %v402
        %420 = vmatprep.subr.mxu0 0.0
        %421 = vmatpush1.msra.mxu0 %v416
        %422 = vmatprep.subr.mxu0 0.0
        %423 = vmatpush1.msra.mxu0 0.0
        %424 = vmatprep.subr.mxu0 0.0
        %425 = vmatpush1.msra.mxu0 0.0
        %426 = vmatprep.subr.mxu0 0.0
        %427 = vmatpush1.msra.mxu0 0.0
        %428 = vmatprep.subr.mxu0 0.0
        %429 = vmatpush1.msra.mxu0 0.0
        %430 = vmatprep.subr.mxu0 0.0
        %431 = vmatpush1.msra.mxu0 0.0
        %432 = vmatprep.subr.mxu0 0.0
        %433 = vmatpush1.msra.mxu0 0.0
        %434 = vmatprep.subr.mxu0 0.0
        %435 = vmatpush1.msra.mxu0 0.0
        %436 = vmatprep.subr.mxu0 0.0
        %437 = vmatpush1.msra.mxu0 0.0
        %438 = vmatprep.subr.mxu0 0.0
        %439 = vmatpush1.msra.mxu0 0.0
        %440 = vmatprep.subr.mxu0 0.0
        %441 = vmatpush1.msra.mxu0 0.0
        %442 = vmatprep.subr.mxu0 0.0
        %443 = vmatpush1.msra.mxu0 0.0
        %444 = vmatprep.subr.mxu0 0.0
        %445 = vmatpush1.msra.mxu0 0.0
        %446 = vmatprep.subr.mxu0 0.0
        %447 = vmatpush1.msra.mxu0 0.0
        %448 = vmatprep.subr.mxu0 0.0
        %449 = vmatpush1.msra.mxu0 0.0
        %450 = vmatprep.subr.mxu0 0.0
        %451 = vmatpush1.msra.mxu0 0.0
        %452 = vmatprep.subr.mxu0 0.0
        %453 = vmatpush1.msra.mxu0 0.0
        %454 = vmatprep.subr.mxu0 0.0
        %455 = vmatpush1.msra.mxu0 0.0
        %456 = vmatprep.subr.mxu0 0.0
        %457 = vmatpush1.msra.mxu0 0.0
        %458 = vmatprep.subr.mxu0 0.0
        %459 = vmatpush1.msra.mxu0 0.0
        %460 = vmatprep.subr.mxu0 0.0
        %461 = vmatpush1.msra.mxu0 0.0
        %462 = vmatprep.subr.mxu0 0.0
        %463 = vmatpush1.msra.mxu0 0.0
        %464 = vmatprep.subr.mxu0 0.0
        %465 = vmatpush1.msra.mxu0 0.0
        %466 = vmatprep.subr.mxu0 0.0
        %467 = vmatpush1.msra.mxu0 0.0
        %468 = vmatprep.subr.mxu0 0.0
        %469 = vmatpush1.msra.mxu0 0.0
        %470 = vmatprep.subr.mxu0 0.0
        %471 = vmatpush1.msra.mxu0 0.0
        %472 = vmatprep.subr.mxu0 0.0
        %473 = vmatpush1.msra.mxu0 0.0
        %474 = vmatprep.subr.mxu0 0.0
        %475 = vmatpush1.msra.mxu0 0.0
        %476 = vmatprep.subr.mxu0 0.0
        %477 = vmatpush1.msra.mxu0 0.0
        %478 = vmatprep.subr.mxu0 0.0
        %479 = vmatpush1.msra.mxu0 0.0
        %480 = vmatprep.subr.mxu0 0.0
        %481 = vmatpush1.msra.mxu0 0.0
        %482 = vmatprep.mubr.f32.mxu0 0.0
        %483 = vmatmul.mubr.f32.gmra.mrb[0].mxu0 %v413
        %v484 = vpop.f32.mrb[0].mxu0
        %v485 = vadd.f32 %v409, %v484
        %v486 = vpop.f32.mrb[0].mxu0
        %487 = vdwg.mxu0
        %v488 = vmax.f32 %v485, 0.0
        %v489 = vld [vmem:[%s5] sm:$0x1]
        %v490 = vld [vmem:[#allocation2] sm:$0x1]
        %492 = vset.pattern.permute.xlu0 0
        %493 = vperm.xlu0 %492, %v490
        %v494 = vpop.permute.xlu0 %493
        %v496 = vlaneseq
        %v497 = vshrl.u32 %v496, 7
        %v498 = vsub.s32 0, %v497
        %v499 = vrot.slane %v494, %v498
        %vm500 = vcmask 64512
        %v502 = vsel %vm500, %v489, 0
        %504 = vmatprep.subr.mxu0 0.0
        %505 = vmatpush1.msra.mxu0 %v488
        %506 = vmatprep.subr.mxu0 0.0
        %507 = vmatpush1.msra.mxu0 0.0
        %508 = vmatprep.subr.mxu0 0.0
        %509 = vmatpush1.msra.mxu0 0.0
        %510 = vmatprep.subr.mxu0 0.0
        %511 = vmatpush1.msra.mxu0 0.0
        %512 = vmatprep.subr.mxu0 0.0
        %513 = vmatpush1.msra.mxu0 0.0
        %514 = vmatprep.subr.mxu0 0.0
        %515 = vmatpush1.msra.mxu0 0.0
        %516 = vmatprep.subr.mxu0 0.0
        %517 = vmatpush1.msra.mxu0 0.0
        %518 = vmatprep.subr.mxu0 0.0
        %519 = vmatpush1.msra.mxu0 0.0
        %520 = vmatprep.subr.mxu0 0.0
        %521 = vmatpush1.msra.mxu0 0.0
        %522 = vmatprep.subr.mxu0 0.0
        %523 = vmatpush1.msra.mxu0 0.0
        %524 = vmatprep.subr.mxu0 0.0
        %525 = vmatpush1.msra.mxu0 0.0
        %526 = vmatprep.subr.mxu0 0.0
        %527 = vmatpush1.msra.mxu0 0.0
        %528 = vmatprep.subr.mxu0 0.0
        %529 = vmatpush1.msra.mxu0 0.0
        %530 = vmatprep.subr.mxu0 0.0
        %531 = vmatpush1.msra.mxu0 0.0
        %532 = vmatprep.subr.mxu0 0.0
        %533 = vmatpush1.msra.mxu0 0.0
        %534 = vmatprep.subr.mxu0 0.0
        %535 = vmatpush1.msra.mxu0 0.0
        %536 = vmatprep.subr.mxu0 0.0
        %537 = vmatpush1.msra.mxu0 0.0
        %538 = vmatprep.subr.mxu0 0.0
        %539 = vmatpush1.msra.mxu0 0.0
        %540 = vmatprep.subr.mxu0 0.0
        %541 = vmatpush1.msra.mxu0 0.0
        %542 = vmatprep.subr.mxu0 0.0
        %543 = vmatpush1.msra.mxu0 0.0
        %544 = vmatprep.subr.mxu0 0.0
        %545 = vmatpush1.msra.mxu0 0.0
        %546 = vmatprep.subr.mxu0 0.0
        %547 = vmatpush1.msra.mxu0 0.0
        %548 = vmatprep.subr.mxu0 0.0
        %549 = vmatpush1.msra.mxu0 0.0
        %550 = vmatprep.subr.mxu0 0.0
        %551 = vmatpush1.msra.mxu0 0.0
        %552 = vmatprep.subr.mxu0 0.0
        %553 = vmatpush1.msra.mxu0 0.0
        %554 = vmatprep.subr.mxu0 0.0
        %555 = vmatpush1.msra.mxu0 0.0
        %556 = vmatprep.subr.mxu0 0.0
        %557 = vmatpush1.msra.mxu0 0.0
        %558 = vmatprep.subr.mxu0 0.0
        %559 = vmatpush1.msra.mxu0 0.0
        %560 = vmatprep.subr.mxu0 0.0
        %561 = vmatpush1.msra.mxu0 0.0
        %562 = vmatprep.subr.mxu0 0.0
        %563 = vmatpush1.msra.mxu0 0.0
        %564 = vmatprep.subr.mxu0 0.0
        %565 = vmatpush1.msra.mxu0 0.0
        %566 = vmatprep.subr.mxu0 0.0
        %567 = vmatpush1.msra.mxu0 0.0
        %568 = vmatprep.mubr.f32.mxu0 0.0
        %569 = vmatmul.mubr.f32.gmra.mrb[0].mxu0 %v502
        %v570 = vpop.f32.mrb[0].mxu0
        %v571 = vadd.f32 %v499, %v570
        %v572 = vpop.f32.mrb[0].mxu0
        %573 = vdwg.mxu0
        %v574 = vsub.f32 0.0, %v571
        %v575 = vmul.f32 %v574, 1.442695
        %v576 = vpow.pop %v575
        %v577 = vadd.f32 %v576, 1.0
        %v578 = vrcp.pop %v577
        %579 = vst [vmem:[%s296] sm:$0x1] %v578
        %s580 = sand.u32 %s186, 1
        %s581 = scalar_lea.sflag [#allocation5], %s580
        %s582 = sand.u32 %s186, 1
        %s583 = scalar_lea.vmem [#allocation6], %s582
        // Predicated region
        $region53: #{tpu_custom_call.1} parent=47 // pred_check
          %p584 = pneg %p196
        $region54: #{tpu_custom_call.1} parent=47 // pred_check_branch
          %586 = sbr.rel (%p584) target = $region56
        $region55: #{tpu_custom_call.1} parent=47 // pred_region
          %s588 = ssub.s32 16, 16
          %589 = vsyncadd %s581, %s588
          %s590 = smul.addr %s26, 16
          %s591 = scalar_lea.hbm %s7, %s590
          %s593 = sshll.u32 %s583, 4
          %s594 = int_to_ptr.vmem [resolvable:$true] %s593
          %596 = dma.vmem_to_hbm [thread:$0]  %s594, 16, %s591, %s581
        $region56: #{tpu_custom_call.1} parent=47 // pred_fallthru
          _
      $region48: #{tpu_custom_call.1} parent=5 // pred_fallthru
        _
      %p597 = scmp.le.s32.totalorder 2, %s21
      // Predicated region
      $region57: #{tpu_custom_call.1} parent=5 // pred_check
        %p598 = pneg %p597
      $region58: #{tpu_custom_call.1} parent=5 // pred_check_branch
        %600 = sbr.rel (%p598) target = $region60
      $region59: #{tpu_custom_call.1} parent=5 // pred_region
        %s601 = ssub.s32 %s21, 2
        // Predicated region
        $region61: #{tpu_custom_call.1} parent=59 // pred_check
          %p602 = pneg %p202
        $region62: #{tpu_custom_call.1} parent=59 // pred_check_branch
          %604 = sbr.rel (%p602) target = $region64
        $region63: #{tpu_custom_call.1} parent=59 // pred_region
          %s605 = sand.u32 %s187, 1
          %s606 = scalar_lea.sflag [#allocation5], %s605
          %s607 = sand.u32 %s187, 1
          %s608 = scalar_lea.vmem [#allocation6], %s607
          %609 = dma.done %s606, 16
        $region64: #{tpu_custom_call.1} parent=59 // pred_fallthru
          _
      $region60: #{tpu_custom_call.1} parent=5 // pred_fallthru
        _
    $region6: #{tpu_custom_call.1} parent=1 // loop_footer
      %s25 = sadd.s32 1, %s21
    $region7: #{tpu_custom_call.1} parent=1 // loop_footer_branch
      %20 = sbr.rel target = $region3
    $region8: #{tpu_custom_call.1} parent=1 // loop_exit
      _
    %610 = vsyncpa [#allocation4], 1
    %s611 = scalar_lea.sflag [#allocation4], 1
    %612 = vsyncpa %s611, 1
    %613 = vsyncpa [#allocation5], 1
    %s614 = scalar_lea.sflag [#allocation5], 1
    %615 = vsyncpa %s614, 1

</llo_original>
